<compile_context>
chip_gen: v7x
topology: tpu7x:2x2x1
jax: 0.10.0
libtpu: 0.0.40
codegen_flags: <defaults>
</compile_context>

<pallas_src>
import functools
import math

import jax
import jax.numpy as jnp
from jax.experimental import pallas as pl
from jax.experimental.pallas import tpu as pltpu

_MIB = 1 << 20


# ----------------------------- pooling core ------------------------------

def _plan_pool(kernel_size: int, stride: int, l_out: int):
    """Static plan for the windowed-sum compute."""
    if stride != 1:
        return ("rowloop", 0, 0, 0)
    if kernel_size >= 9:
        a = max(2, math.isqrt(kernel_size))
        b = kernel_size // a
        if b >= 2:
            return ("two_level", a, b, l_out + (b - 1) * a)
    return ("direct", 0, 0, 0)


def _pool_and_store(xp_ref, o_ref, p_ref, *, kernel_size, stride, l_out, plan):
    """xp_ref: (G, span, C) padded block in VMEM; writes (G, l_out, C) to o_ref."""
    mode, a, b, _ = plan
    g, _, c = xp_ref.shape
    inv_k = 1.0 / float(kernel_size)

    if mode == "direct":
        acc = jnp.zeros((g, l_out, c), jnp.float32)
        for j in range(kernel_size):
            acc = acc + xp_ref[:, j:j + l_out, :].astype(jnp.float32)
        o_ref[...] = (acc * inv_k).astype(o_ref.dtype)

    elif mode == "two_level":
        u = p_ref.shape[1]
        # level 1: partial sums of groups of `a` consecutive taps
        pacc = jnp.zeros((g, u, c), jnp.float32)
        for i in range(a):
            pacc = pacc + xp_ref[:, i:i + u, :].astype(jnp.float32)
        p_ref[...] = pacc
        # level 2: combine the b group sums + remainder taps
        acc = jnp.zeros((g, l_out, c), jnp.float32)
        for q in range(b):
            acc = acc + p_ref[:, q * a:q * a + l_out, :]
        for j in range(a * b, kernel_size):
            acc = acc + xp_ref[:, j:j + l_out, :].astype(jnp.float32)
        o_ref[...] = (acc * inv_k).astype(o_ref.dtype)

    else:  # "rowloop": generic stride > 1 (not the PatchTST path)
        # TODO(synk): stride > 1 path is correctness-first (per-output-row window sum).
        def body(t, carry):
            start = pl.multiple_of(t * stride, stride)
            w = xp_ref[:, pl.ds(start, kernel_size), :].astype(jnp.float32)
            row = jnp.sum(w, axis=1, keepdims=True) * inv_k  # (G, 1, C)
            o_ref[:, pl.ds(t, 1), :] = row.astype(o_ref.dtype)
            return carry
        jax.lax.fori_loop(0, l_out, body, 0)


# --------------------------- kernel builders ------------------------------

def _make_single_kernel(*, kernel_size, stride, l_in, l_out, plan):
    """Whole sequence per grid step; replicate padding built in VMEM scratch."""
    pf = (kernel_size - 1) // 2
    span = (l_out - 1) * stride + kernel_size        # padded rows actually needed
    main_len = min(l_in, span - pf)
    rf = span - pf - main_len
    use_p = plan[0] == "two_level"

    def kernel(x_ref, o_ref, xp_ref, *maybe_p):
        p_ref = maybe_p[0] if use_p else None
        g = x_ref.shape[0]
        c = x_ref.shape[2]
        if pf > 0:
            xp_ref[:, 0:pf, :] = jnp.broadcast_to(x_ref[:, 0:1, :], (g, pf, c))
        xp_ref[:, pf:pf + main_len, :] = x_ref[:, 0:main_len, :]
        if rf > 0:
            xp_ref[:, pf + main_len:span, :] = jnp.broadcast_to(
                x_ref[:, l_in - 1:l_in, :], (g, rf, c))
        _pool_and_store(xp_ref, o_ref, p_ref,
                        kernel_size=kernel_size, stride=stride,
                        l_out=l_out, plan=plan)

    return kernel, span


def _make_tiled_kernel(*, kernel_size, tl, halo, n_tiles, plan):
    """stride == 1, L tiled with halo blocks; first/last tiles replicate the edge row."""
    pf = (kernel_size - 1) // 2
    pe = kernel_size // 2
    span = tl + kernel_size - 1
    use_p = plan[0] == "two_level"

    def kernel(x_ref, lh_ref, rh_ref, o_ref, xp_ref, *maybe_p):
        p_ref = maybe_p[0] if use_p else None
        t = pl.program_id(1)
        g = x_ref.shape[0]
        c = x_ref.shape[2]

        # middle: the tile's own rows
        xp_ref[:, pf:pf + tl, :] = x_ref[...]

        if pf > 0:
            @pl.when(t == 0)
            def _():
                xp_ref[:, 0:pf, :] = jnp.broadcast_to(x_ref[:, 0:1, :], (g, pf, c))

            @pl.when(t > 0)
            def _():
                xp_ref[:, 0:pf, :] = lh_ref[:, halo - pf:halo, :]

        if pe > 0:
            @pl.when(t == n_tiles - 1)
            def _():
                xp_ref[:, pf + tl:span, :] = jnp.broadcast_to(
                    x_ref[:, tl - 1:tl, :], (g, pe, c))

            @pl.when(t < n_tiles - 1)
            def _():
                xp_ref[:, pf + tl:span, :] = rh_ref[:, 0:pe, :]

        _pool_and_store(xp_ref, o_ref, p_ref,
                        kernel_size=kernel_size, stride=1,
                        l_out=tl, plan=plan)

    return kernel, span


# ------------------------------- wrapper ----------------------------------

def _pick_batch_block(b, bytes_per_batch, cap_bytes=2 * _MIB):
    """Largest divisor of b whose per-step footprint stays under cap_bytes."""
    best = 1
    for g in range(1, b + 1):
        if b % g == 0 and g * bytes_per_batch <= cap_bytes:
            best = g
    return best


def _vmem_limit(need_bytes):
    """Scoped-VMEM limit: actual per-step need * 1.5 + headroom, clamped to [32, 48] MiB."""
    return int(min(48 * _MIB, max(32 * _MIB, int(1.5 * need_bytes) + 4 * _MIB)))


@functools.partial(jax.jit, static_argnames=("kernel_size", "stride", "max_tile"))
def moving_avg(x: jax.Array, kernel_size: int, stride: int = 1,
               max_tile: int = 512) -> jax.Array:
    """Pallas implementation of the PatchTST moving_avg module.  x: (B, L, C)."""
    assert x.ndim == 3
    B, L, C = x.shape
    pf = (kernel_size - 1) // 2
    pe = kernel_size // 2
    L_pad = L + kernel_size - 1
    L_out = (L_pad - kernel_size) // stride + 1
    itemsize = jnp.dtype(x.dtype).itemsize

    # ---------------- tiled (halo) path: long sequences, stride == 1 ----------------
    if stride == 1 and L > max_tile:
        halo = max(8, -(-max(pf, pe, 1) // 8) * 8)          # round_up to 8
        tl = 0
        cand = (max_tile // halo) * halo
        while cand >= halo:                                  # largest multiple of halo dividing L
            if L % cand == 0:
                tl = cand
                break
            cand -= halo
        if tl > 0 and halo <= tl:
            n_tiles = L // tl
            plan = _plan_pool(kernel_size, 1, tl)
            kernel, span = _make_tiled_kernel(
                kernel_size=kernel_size, tl=tl, halo=halo,
                n_tiles=n_tiles, plan=plan)

            # per-batch per-step bytes: in + 2 halos + out + padded scratch (+ partial sums)
            per_batch = (2 * tl + 2 * halo + span) * C * itemsize
            if plan[0] == "two_level":
                per_batch += plan[3] * C * 4
            gb = _pick_batch_block(B, per_batch)

            scratch = [pltpu.VMEM((gb, span, C), x.dtype)]
            if plan[0] == "two_level":
                scratch.append(pltpu.VMEM((gb, plan[3], C), jnp.float32))

            blk_h = tl // halo
            n_hblk = L // halo
            # double-buffered pipelined blocks + single-buffered scratch
            need = gb * (2 * (2 * tl + 2 * halo) * C * itemsize
                         + span * C * itemsize
                         + (plan[3] * C * 4 if plan[0] == "two_level" else 0))
            return pl.pallas_call(
                kernel,
                out_shape=jax.ShapeDtypeStruct((B, L_out, C), x.dtype),
                grid_spec=pltpu.PrefetchScalarGridSpec(
                    num_scalar_prefetch=0,
                    grid=(B // gb, n_tiles),
                    in_specs=[
                        pl.BlockSpec((gb, tl, C), lambda b, t: (b, t, 0)),
                        pl.BlockSpec(
                            (gb, halo, C),
                            lambda b, t: (b, jnp.maximum(t * blk_h - 1, 0), 0)),
                        pl.BlockSpec(
                            (gb, halo, C),
                            lambda b, t: (b, jnp.minimum((t + 1) * blk_h, n_hblk - 1), 0)),
                    ],
                    out_specs=pl.BlockSpec((gb, tl, C), lambda b, t: (b, t, 0)),
                    scratch_shapes=scratch,
                ),
                compiler_params=pltpu.CompilerParams(
                    dimension_semantics=("parallel", "parallel"),
                    vmem_limit_bytes=_vmem_limit(need),
                ),
            )(x, x, x)

    # ---------------- single-block path: whole sequence per grid step ----------------
    plan = _plan_pool(kernel_size, stride, L_out)
    kernel, span = _make_single_kernel(
        kernel_size=kernel_size, stride=stride, l_in=L, l_out=L_out, plan=plan)

    per_batch = (L + L_out + span) * C * itemsize
    if plan[0] == "two_level":
        per_batch += plan[3] * C * 4
    gb = _pick_batch_block(B, per_batch)

    scratch = [pltpu.VMEM((gb, span, C), x.dtype)]
    if plan[0] == "two_level":
        scratch.append(pltpu.VMEM((gb, plan[3], C), jnp.float32))

    need = gb * (2 * (L + L_out) * C * itemsize
                 + span * C * itemsize
                 + (plan[3] * C * 4 if plan[0] == "two_level" else 0))
    return pl.pallas_call(
        kernel,
        out_shape=jax.ShapeDtypeStruct((B, L_out, C), x.dtype),
        grid_spec=pltpu.PrefetchScalarGridSpec(
            num_scalar_prefetch=0,
            grid=(B // gb,),
            in_specs=[pl.BlockSpec((gb, L, C), lambda b: (b, 0, 0))],
            out_specs=pl.BlockSpec((gb, L_out, C), lambda b: (b, 0, 0)),
            scratch_shapes=scratch,
        ),
        compiler_params=pltpu.CompilerParams(
            dimension_semantics=("parallel",),
            vmem_limit_bytes=_vmem_limit(need),
        ),
    )(x)


# ------------------------------- reference --------------------------------

def _reference(x, kernel_size, stride):
    """Pure-JAX reference mirroring the PyTorch forward (f32 math)."""
    front = jnp.repeat(x[:, 0:1, :], (kernel_size - 1) // 2, axis=1)
    end = jnp.repeat(x[:, -1:, :], kernel_size // 2, axis=1)
    xp = jnp.concatenate([front, x, end], axis=1).astype(jnp.float32)
    L_pad = xp.shape[1]
    L_out = (L_pad - kernel_size) // stride + 1
    wins = [xp[:, j * stride:j * stride + kernel_size, :].mean(axis=1)
            for j in range(L_out)]
    return jnp.stack(wins, axis=1)


if __name__ == "__main__":
    key = jax.random.PRNGKey(0)

    cases = [
        # (B, L, C, k, s, dtype, max_tile, atol)
        (2, 16, 8, 5, 1, jnp.float32, 512, 1e-5),    # single block, direct taps
        (2, 64, 8, 25, 1, jnp.float32, 32, 1e-5),    # tiled (halo) + two-level sum
        (2, 64, 8, 5, 1, jnp.float32, 32, 1e-5),     # tiled (halo) + direct taps
        (4, 64, 8, 25, 1, jnp.float32, 32, 1e-5),    # tiled + batch packing (gb > 1)
        (2, 16, 8, 4, 2, jnp.float32, 512, 1e-5),    # stride > 1 row loop
        (2, 16, 8, 1, 1, jnp.float32, 512, 1e-5),    # kernel_size == 1 edge case
        (3, 24, 7, 7, 1, jnp.float32, 512, 1e-5),    # odd C / odd B, batch-packed block
        (2, 16, 8, 6, 1, jnp.float32, 512, 1e-5),    # even kernel (asymmetric pad)
        (2, 336, 7, 25, 1, jnp.float32, 512, 1e-5),  # realistic PatchTST shape
        (2, 1024, 8, 25, 1, jnp.float32, 512, 1e-5), # long sequence, tiled path
        (2, 32, 8, 5, 1, jnp.bfloat16, 512, 2e-2),   # bf16 input
    ]

    for (B, L, C, k, s, dtype, max_tile, atol) in cases:
        key, sub = jax.random.split(key)
        x = jax.random.normal(sub, (B, L, C), dtype=jnp.float32).astype(dtype)

        y = moving_avg(x, kernel_size=k, stride=s, max_tile=max_tile)
        y = jax.block_until_ready(y)

        y_ref = _reference(x, k, s)
        assert y.shape == y_ref.shape, (y.shape, y_ref.shape, (B, L, C, k, s))
        assert y.dtype == x.dtype, (y.dtype, x.dtype)
        assert jnp.allclose(y.astype(jnp.float32), y_ref, atol=atol, rtol=atol), (
            "mismatch vs reference", (B, L, C, k, s, dtype, max_tile))

    print("KERNEL_OK")
</pallas_src>

<mosaic_0001>
module attributes {stable_mosaic.version = 11 : i64} {
  func.func @kernel(%arg0: i32, %arg1: memref<2x16x8xf32, #tpu.memory_space<vmem>>, %arg2: memref<2x16x8xf32, #tpu.memory_space<vmem>>, %arg3: memref<2x20x8xf32, #tpu.memory_space<vmem>>) attributes {dimension_semantics = [#tpu.dimension_semantics<parallel>], iteration_bounds = array<i64: 1>, scalar_prefetch = 0 : i64, scratch_operands = 1 : i64, tpu.core_type = #tpu.core_type<tc>, window_params = [{transform_indices = @transform_0, window_bounds = array<i64: 2, 16, 8>}, {transform_indices = @transform_1, window_bounds = array<i64: 2, 16, 8>}]} {
    %c0 = arith.constant 0 : index
    %c0_0 = arith.constant 0 : index
    %c0_1 = arith.constant 0 : index
    %0 = vector.load %arg1[%c0, %c0_0, %c0_1] : memref<2x16x8xf32, #tpu.memory_space<vmem>>, vector<2x1x8xf32>
    %1 = vector.shape_cast %0 : vector<2x1x8xf32> to vector<2x1x8xf32>
    %2 = vector.broadcast %1 : vector<2x1x8xf32> to vector<2x2x8xf32>
    %c0_2 = arith.constant 0 : index
    %c0_3 = arith.constant 0 : index
    %c0_4 = arith.constant 0 : index
    %3 = vector.load %arg3[%c0_2, %c0_3, %c0_4] : memref<2x20x8xf32, #tpu.memory_space<vmem>>, vector<2x2x8xf32>
    tpu.vector_store %arg3[%c0_2, %c0_3, %c0_4], %2 {strides = array<i32>} : memref<2x20x8xf32, #tpu.memory_space<vmem>>, vector<2x2x8xf32>,
    %c0_5 = arith.constant 0 : index
    %c0_6 = arith.constant 0 : index
    %c0_7 = arith.constant 0 : index
    %4 = vector.load %arg1[%c0_5, %c0_6, %c0_7] : memref<2x16x8xf32, #tpu.memory_space<vmem>>, vector<2x16x8xf32>
    %c0_8 = arith.constant 0 : index
    %c2 = arith.constant 2 : index
    %c0_9 = arith.constant 0 : index
    %5 = vector.load %arg3[%c0_8, %c2, %c0_9] : memref<2x20x8xf32, #tpu.memory_space<vmem>>, vector<2x16x8xf32>
    tpu.vector_store %arg3[%c0_8, %c2, %c0_9], %4 {strides = array<i32>} : memref<2x20x8xf32, #tpu.memory_space<vmem>>, vector<2x16x8xf32>,
    %c0_10 = arith.constant 0 : index
    %c15 = arith.constant 15 : index
    %c0_11 = arith.constant 0 : index
    %6 = vector.load %arg1[%c0_10, %c15, %c0_11] : memref<2x16x8xf32, #tpu.memory_space<vmem>>, vector<2x1x8xf32>
    %7 = vector.shape_cast %6 : vector<2x1x8xf32> to vector<2x1x8xf32>
    %8 = vector.broadcast %7 : vector<2x1x8xf32> to vector<2x2x8xf32>
    %c0_12 = arith.constant 0 : index
    %c18 = arith.constant 18 : index
    %c0_13 = arith.constant 0 : index
    %9 = vector.load %arg3[%c0_12, %c18, %c0_13] : memref<2x20x8xf32, #tpu.memory_space<vmem>>, vector<2x2x8xf32>
    tpu.vector_store %arg3[%c0_12, %c18, %c0_13], %8 {strides = array<i32>} : memref<2x20x8xf32, #tpu.memory_space<vmem>>, vector<2x2x8xf32>,
    %cst = arith.constant 0.000000e+00 : f32
    %10 = vector.broadcast %cst : f32 to vector<2x16x8xf32>
    %c0_14 = arith.constant 0 : index
    %c0_15 = arith.constant 0 : index
    %c0_16 = arith.constant 0 : index
    %11 = vector.load %arg3[%c0_14, %c0_15, %c0_16] : memref<2x20x8xf32, #tpu.memory_space<vmem>>, vector<2x16x8xf32>
    %12 = arith.addf %10, %11 : vector<2x16x8xf32>
    %c0_17 = arith.constant 0 : index
    %c1 = arith.constant 1 : index
    %c0_18 = arith.constant 0 : index
    %13 = vector.load %arg3[%c0_17, %c1, %c0_18] : memref<2x20x8xf32, #tpu.memory_space<vmem>>, vector<2x16x8xf32>
    %14 = arith.addf %12, %13 : vector<2x16x8xf32>
    %c0_19 = arith.constant 0 : index
    %c2_20 = arith.constant 2 : index
    %c0_21 = arith.constant 0 : index
    %15 = vector.load %arg3[%c0_19, %c2_20, %c0_21] : memref<2x20x8xf32, #tpu.memory_space<vmem>>, vector<2x16x8xf32>
    %16 = arith.addf %14, %15 : vector<2x16x8xf32>
    %c0_22 = arith.constant 0 : index
    %c3 = arith.constant 3 : index
    %c0_23 = arith.constant 0 : index
    %17 = vector.load %arg3[%c0_22, %c3, %c0_23] : memref<2x20x8xf32, #tpu.memory_space<vmem>>, vector<2x16x8xf32>
    %18 = arith.addf %16, %17 : vector<2x16x8xf32>
    %c0_24 = arith.constant 0 : index
    %c4 = arith.constant 4 : index
    %c0_25 = arith.constant 0 : index
    %19 = vector.load %arg3[%c0_24, %c4, %c0_25] : memref<2x20x8xf32, #tpu.memory_space<vmem>>, vector<2x16x8xf32>
    %20 = arith.addf %18, %19 : vector<2x16x8xf32>
    %cst_26 = arith.constant 2.000000e-01 : f32
    %21 = vector.broadcast %cst_26 : f32 to vector<2x16x8xf32>
    %22 = arith.mulf %20, %21 : vector<2x16x8xf32>
    %c0_27 = arith.constant 0 : index
    %c0_28 = arith.constant 0 : index
    %c0_29 = arith.constant 0 : index
    %23 = vector.load %arg2[%c0_27, %c0_28, %c0_29] : memref<2x16x8xf32, #tpu.memory_space<vmem>>, vector<2x16x8xf32>
    tpu.vector_store %arg2[%c0_27, %c0_28, %c0_29], %22 {strides = array<i32>} : memref<2x16x8xf32, #tpu.memory_space<vmem>>, vector<2x16x8xf32>,
    return
  }
  func.func @transform_0(%arg0: i32) -> (i32, i32, i32) {
    %c0_i32 = arith.constant 0 : i32
    %c0_i32_0 = arith.constant 0 : i32
    %c0_i32_1 = arith.constant 0 : i32
    return %arg0, %c0_i32, %c0_i32_0 : i32, i32, i32
  }
  func.func @transform_1(%arg0: i32) -> (i32, i32, i32) {
    %c0_i32 = arith.constant 0 : i32
    %c0_i32_0 = arith.constant 0 : i32
    %c0_i32_1 = arith.constant 0 : i32
    return %arg0, %c0_i32, %c0_i32_0 : i32, i32, i32
  }
}

</mosaic_0001>

<llo_original>
// kernel: moving_avg.1
$region0: #{moving_avg.1}
  #allocation0 [shape = 'u32[]', space=smem, size = 0x4, offset = 0x4, fixed_abs, tag = 'smem constant byte address 0x4 - core index']
  #allocation1 [shape = 'u32[144,128]{1,0:T(1,128)}', space=vmem, size = 0x12000, scoped, tag = 'internal scratch']
  #allocation2 [shape = 'f32[2,20,8]{2,1,0:T(8,128)}', space=vmem, size = 0x6000, scoped, tag = 'scratch operand']
  %s0 = inlined_call_operand.vmem [shape: f32[2,16,8], index: 0, kind: input, shape index: {}]
  %s1 = inlined_call_operand.vmem [shape: f32[2,16,8], index: 1, kind: output, shape index: {}]
  %s2 = sld [smem:[#allocation0]]
  $region14: #{moving_avg.1} parent=0
    _
  %s4 = ssub.s32 1, %s2
  %s5 = scalar_select 0, %s4, %s2
  // Predicated region
  $region2: #{moving_avg.1} parent=0 // pred_check
    _
  $region3: #{moving_avg.1} parent=0 // pred_check_branch
    %7 = sbr.rel (0) target = $region5
  $region4: #{moving_avg.1} parent=0 // pred_region
    _
  $region5: #{moving_avg.1} parent=0 // pred_fallthru
    _
  %v8 = vld [vmem:[%s0] sm:$0x1]
  %v9 = vld [vmem:[%s0 + $0x10] sm:$0x1]
  %v10 = vlaneseq
  %v11 = vshrl.u32 %v10, 7
  %v12 = vsub.s32 0, %v11
  %v13 = vrot.slane %v8, %v12
  %v14 = vlaneseq
  %v15 = vshrl.u32 %v14, 7
  %v16 = vsub.s32 0, %v15
  %v17 = vrot.slane %v9, %v16
  %vm18 = vcmask 58368
  %19 = vst.msk [vmem:[#allocation2] sm:$0x3] %vm18, %v13
  %20 = vst.msk [vmem:[#allocation2 + $0x18] sm:$0x3] %vm18, %v17
  %v21 = vld [vmem:[%s0] sm:$0xff]
  %v22 = vld [vmem:[%s0 + $0x8] sm:$0xff]
  %v23 = vld [vmem:[%s0 + $0x10] sm:$0xff]
  %v24 = vld [vmem:[%s0 + $0x18] sm:$0xff]
  %vm25 = vcmask 64512
  %26 = vst.msk [vmem:[#allocation2 + $0x2] sm:$0xff] %vm25, %v21
  %27 = vst.msk [vmem:[#allocation2 + $0xa] sm:$0xff] %vm25, %v22
  %28 = vst.msk [vmem:[#allocation2 + $0x1a] sm:$0xff] %vm25, %v23
  %29 = vst.msk [vmem:[#allocation2 + $0x22] sm:$0xff] %vm25, %v24
  %v30 = vld [vmem:[%s0 + $0xf] sm:$0x1]
  %v31 = vld [vmem:[%s0 + $0x1f] sm:$0x1]
  %v32 = vlaneseq
  %v33 = vshrl.u32 %v32, 7
  %v34 = vsub.s32 0, %v33
  %v35 = vrot.slane %v30, %v34
  %v36 = vlaneseq
  %v37 = vshrl.u32 %v36, 7
  %v38 = vsub.s32 0, %v37
  %v39 = vrot.slane %v31, %v38
  %40 = vst.msk [vmem:[#allocation2 + $0x12] sm:$0x3] %vm18, %v35
  %41 = vst.msk [vmem:[#allocation2 + $0x2a] sm:$0x3] %vm18, %v39
  %v42 = vld [vmem:[#allocation2] sm:$0xff]
  %v43 = vld [vmem:[#allocation2 + $0x8] sm:$0xff]
  %v44 = vld [vmem:[#allocation2 + $0x18] sm:$0xff]
  %v45 = vld [vmem:[#allocation2 + $0x20] sm:$0xff]
  %v46 = vadd.f32 %v42, 0.0
  %v47 = vadd.f32 %v43, 0.0
  %v48 = vadd.f32 %v44, 0.0
  %v49 = vadd.f32 %v45, 0.0
  %v50 = vld [vmem:[#allocation2 + $0x1] sm:$0xff]
  %v51 = vld [vmem:[#allocation2 + $0x9] sm:$0xff]
  %v52 = vld [vmem:[#allocation2 + $0x19] sm:$0xff]
  %v53 = vld [vmem:[#allocation2 + $0x21] sm:$0xff]
  %v54 = vadd.f32 %v46, %v50
  %v55 = vadd.f32 %v47, %v51
  %v56 = vadd.f32 %v48, %v52
  %v57 = vadd.f32 %v49, %v53
  %v58 = vld [vmem:[#allocation2 + $0x2] sm:$0xff]
  %v59 = vld [vmem:[#allocation2 + $0xa] sm:$0xff]
  %v60 = vld [vmem:[#allocation2 + $0x1a] sm:$0xff]
  %v61 = vld [vmem:[#allocation2 + $0x22] sm:$0xff]
  %v62 = vadd.f32 %v54, %v58
  %v63 = vadd.f32 %v55, %v59
  %v64 = vadd.f32 %v56, %v60
  %v65 = vadd.f32 %v57, %v61
  %v66 = vld [vmem:[#allocation2 + $0x3] sm:$0xff]
  %v67 = vld [vmem:[#allocation2 + $0xb] sm:$0xff]
  %v68 = vld [vmem:[#allocation2 + $0x1b] sm:$0xff]
  %v69 = vld [vmem:[#allocation2 + $0x23] sm:$0xff]
  %v70 = vadd.f32 %v62, %v66
  %v71 = vadd.f32 %v63, %v67
  %v72 = vadd.f32 %v64, %v68
  %v73 = vadd.f32 %v65, %v69
  %v74 = vld [vmem:[#allocation2 + $0x4] sm:$0xff]
  %v75 = vld [vmem:[#allocation2 + $0xc] sm:$0xff]
  %v76 = vld [vmem:[#allocation2 + $0x1c] sm:$0xff]
  %v77 = vld [vmem:[#allocation2 + $0x24] sm:$0xff]
  %v78 = vadd.f32 %v70, %v74
  %v79 = vadd.f32 %v71, %v75
  %v80 = vadd.f32 %v72, %v76
  %v81 = vadd.f32 %v73, %v77
  %v82 = vmul.f32 %v78, 0.2
  %v83 = vmul.f32 %v79, 0.2
  %v84 = vmul.f32 %v80, 0.2
  %v85 = vmul.f32 %v81, 0.2
  %86 = vst.msk [vmem:[%s1] sm:$0xff] %vm25, %v82
  %87 = vst.msk [vmem:[%s1 + $0x8] sm:$0xff] %vm25, %v83
  %88 = vst.msk [vmem:[%s1 + $0x10] sm:$0xff] %vm25, %v84
  %89 = vst.msk [vmem:[%s1 + $0x18] sm:$0xff] %vm25, %v85
  // Predicated region
  $region6: #{moving_avg.1} parent=0 // pred_check
    _
  $region7: #{moving_avg.1} parent=0 // pred_check_branch
    %91 = sbr.rel (0) target = $region9
  $region8: #{moving_avg.1} parent=0 // pred_region
    _
  $region9: #{moving_avg.1} parent=0 // pred_fallthru
    _
  // Predicated region
  $region10: #{moving_avg.1} parent=0 // pred_check
    _
  $region11: #{moving_avg.1} parent=0 // pred_check_branch
    %93 = sbr.rel (0) target = $region13
  $region12: #{moving_avg.1} parent=0 // pred_region
    _
  $region13: #{moving_avg.1} parent=0 // pred_fallthru
    _

</llo_original>
